<compile_context>
chip_gen: v6e
topology: v6e:2x2x1
jax: 0.10.0
libtpu: 0.0.40
codegen_flags: <defaults>
</compile_context>

<pallas_src>
import functools

import numpy as np

import jax
import jax.numpy as jnp
from jax.experimental import pallas as pl
from jax.experimental.pallas import tpu as pltpu


def _conv_gn_relu_kernel(x_ref, w_ref, gmat_ref, gamma_ref, beta_ref, o_ref,
                         *, eps, compute_dtype):
    # x_ref:     (B_blk, K, HW)     im2col'd inputs, spatial on the lane axis
    # w_ref:     (Cout, K)          flattened conv weight
    # gmat_ref:  (Cout, Cout)       constant within-group averaging matrix
    # gamma_ref: (Cout, 1)          GroupNorm scale
    # beta_ref:  (Cout, 1)          GroupNorm shift
    # o_ref:     (B_blk, Cout, HW)  channel-major output (NCHW after reshape)
    b_blk = x_ref.shape[0]

    # Invariants hoisted out of the per-sample loop.
    w = w_ref[...].astype(compute_dtype)          # (Cout, K)
    gmat = gmat_ref[...]                          # (Cout, Cout) f32
    gamma = gamma_ref[...]                        # (Cout, 1) f32
    beta = beta_ref[...]                          # (Cout, 1) f32

    for b in range(b_blk):                        # static unroll over the batch block
        xb = x_ref[b].astype(compute_dtype)       # (K, HW)

        # ---- conv: one lane-dense matmul, H*W on the lane axis ----
        acc = jnp.dot(w, xb, preferred_element_type=jnp.float32)   # (Cout, HW) f32

        # ---- GroupNorm (two-pass variance) ----
        mean_c = jnp.mean(acc, axis=-1, keepdims=True)              # (Cout, 1)
        mean_g = jnp.dot(gmat, mean_c, preferred_element_type=jnp.float32)
        centered = acc - mean_g
        var_c = jnp.mean(centered * centered, axis=-1, keepdims=True)
        var_g = jnp.dot(gmat, var_c, preferred_element_type=jnp.float32)
        scale = jax.lax.rsqrt(var_g + eps) * gamma                  # (Cout, 1)
        y = centered * scale + beta

        # ---- ReLU + lane-dense store ----
        o_ref[b] = jnp.maximum(y, 0.0).astype(o_ref.dtype)


def conv_bn_relu(x_nchw, w_oihw, gamma, beta, *, pad, groups_norm=16, eps=1e-5,
                 batch_block=8, compute_dtype=jnp.float32):
    """ConvBnRelu forward. x_nchw: (N, Cin, H, W); w_oihw: (Cout, Cin, KH, KW).

    compute_dtype=jnp.bfloat16 is available for full MXU throughput on the conv
    matmul (stats stay in f32); kept at f32 by default to hold the 1e-4 check.
    """
    # TODO(synk): only stride=1, dilation=1, conv-groups=1 are implemented
    #             (the configuration used by the module).
    N, Cin, H, W = x_nchw.shape
    Cout, wcin, KH, KW = w_oihw.shape
    assert wcin == Cin
    assert Cout % groups_norm == 0, "GroupNorm requires Cout % num_groups == 0"

    Ho = H + 2 * pad - (KH - 1)
    Wo = W + 2 * pad - (KW - 1)
    HW = Ho * Wo
    K = Cin * KH * KW

    # ---- im2col in the wrapper (glue JAX); k = ci*KH*KW + kh*KW + kw ----
    x_pad = jnp.pad(x_nchw, ((0, 0), (0, 0), (pad, pad), (pad, pad)))
    cols = [x_pad[:, :, kh:kh + Ho, kw:kw + Wo]
            for kh in range(KH) for kw in range(KW)]          # each (N, Cin, Ho, Wo)
    x_cols = jnp.stack(cols, axis=2).reshape(N, K, HW)        # (N, K, HW)

    # ---- batch blocking (amortize per-step overhead); pad batch with zeros ----
    b_blk = max(1, min(batch_block, N))
    n_pad = pl.cdiv(N, b_blk) * b_blk
    if n_pad != N:
        x_cols = jnp.pad(x_cols, ((0, n_pad - N), (0, 0), (0, 0)))

    # ---- invariant operands (constant index_map -> VMEM-resident) ----
    w_mat = w_oihw.reshape(Cout, K).astype(jnp.float32)       # (Cout, K)
    cpg = Cout // groups_norm
    gidx = np.arange(Cout) // cpg
    gmat = jnp.asarray((gidx[:, None] == gidx[None, :]).astype(np.float32) / cpg)
    gamma_col = gamma.reshape(Cout, 1).astype(jnp.float32)
    beta_col = beta.reshape(Cout, 1).astype(jnp.float32)

    kernel = functools.partial(_conv_gn_relu_kernel, eps=eps,
                               compute_dtype=compute_dtype)

    out = pl.pallas_call(
        kernel,
        out_shape=jax.ShapeDtypeStruct((n_pad, Cout, HW), jnp.float32),
        grid_spec=pltpu.PrefetchScalarGridSpec(
            num_scalar_prefetch=0,
            grid=(n_pad // b_blk,),
            in_specs=[
                pl.BlockSpec((b_blk, K, HW), lambda i: (i, 0, 0)),
                # Invariant blocks: constant index_map, never re-DMA'd.
                pl.BlockSpec((Cout, K), lambda i: (0, 0)),
                pl.BlockSpec((Cout, Cout), lambda i: (0, 0)),
                pl.BlockSpec((Cout, 1), lambda i: (0, 0)),
                pl.BlockSpec((Cout, 1), lambda i: (0, 0)),
            ],
            out_specs=pl.BlockSpec((b_blk, Cout, HW), lambda i: (i, 0, 0)),
        ),
        compiler_params=pltpu.CompilerParams(
            # Batch steps are independent -> megacore-shardable on v7x.
            dimension_semantics=("parallel",)),
    )(x_cols, w_mat, gmat, gamma_col, beta_col)

    # Kernel already emits channel-major: slice off batch padding and reshape.
    return out[:N].reshape(N, Cout, Ho, Wo)


def _reference(x_nchw, w_oihw, gamma, beta, *, pad, groups_norm=16, eps=1e-5):
    y = jax.lax.conv_general_dilated(
        x_nchw, w_oihw, window_strides=(1, 1),
        padding=((pad, pad), (pad, pad)),
        dimension_numbers=("NCHW", "OIHW", "NCHW"))
    N, C, H, W = y.shape
    g = y.reshape(N, groups_norm, C // groups_norm, H, W)
    mean = g.mean(axis=(2, 3, 4), keepdims=True)
    var = g.var(axis=(2, 3, 4), keepdims=True)
    g = (g - mean) * jax.lax.rsqrt(var + eps)
    y = g.reshape(N, C, H, W) * gamma.reshape(1, C, 1, 1) + beta.reshape(1, C, 1, 1)
    return jnp.maximum(y, 0.0)


if __name__ == "__main__":
    key = jax.random.PRNGKey(0)
    kx1, kw1, kx2, kw2 = jax.random.split(key, 4)

    # 1) conv_gn_layer block: Conv2d(4->32, 3x3, pad=1, no bias) -> GN(16) -> ReLU
    N, Cin, H, W = 2, 4, 16, 16
    Cout, KH, KW, PAD = 32, 3, 3, 1
    x = jax.random.normal(kx1, (N, Cin, H, W), dtype=jnp.float32)
    w = jax.random.normal(kw1, (Cout, Cin, KH, KW), dtype=jnp.float32) * 0.1
    gamma = jnp.ones((Cout,), dtype=jnp.float32)
    beta = jnp.zeros((Cout,), dtype=jnp.float32)

    out = conv_bn_relu(x, w, gamma, beta, pad=PAD)
    out = jax.block_until_ready(out)
    ref = _reference(x, w, gamma, beta, pad=PAD)
    assert out.shape == (N, Cout, H, W)
    assert jnp.allclose(out, ref, atol=1e-4, rtol=1e-4), (
        float(jnp.max(jnp.abs(out - ref))))

    # 2) AttAgreg ConvBnRelu block (1x1 conv), odd batch exercises batch padding
    #    plus a multi-step "parallel" grid, and a non-trivial affine GN.
    N2, Cin2 = 3, 12
    x2 = jax.random.normal(kx2, (N2, Cin2, H, W), dtype=jnp.float32)
    w2 = jax.random.normal(kw2, (Cout, Cin2, 1, 1), dtype=jnp.float32) * 0.1
    gamma2 = 1.0 + 0.1 * jax.random.normal(jax.random.PRNGKey(1), (Cout,), jnp.float32)
    beta2 = 0.1 * jax.random.normal(jax.random.PRNGKey(2), (Cout,), jnp.float32)

    out2 = conv_bn_relu(x2, w2, gamma2, beta2, pad=0, batch_block=2)
    out2 = jax.block_until_ready(out2)
    ref2 = _reference(x2, w2, gamma2, beta2, pad=0)
    assert out2.shape == (N2, Cout, H, W)
    assert jnp.allclose(out2, ref2, atol=1e-4, rtol=1e-4), (
        float(jnp.max(jnp.abs(out2 - ref2))))

    print("KERNEL_OK")
</pallas_src>

<mosaic_0001>
module attributes {stable_mosaic.version = 11 : i64} {
  func.func @_conv_gn_relu_kernel(%arg0: i32, %arg1: memref<2x36x256xf32, #tpu.memory_space<vmem>>, %arg2: memref<32x36xf32, #tpu.memory_space<vmem>>, %arg3: memref<32x32xf32, #tpu.memory_space<vmem>>, %arg4: memref<32x1xf32, #tpu.memory_space<vmem>>, %arg5: memref<32x1xf32, #tpu.memory_space<vmem>>, %arg6: memref<2x32x256xf32, #tpu.memory_space<vmem>>) attributes {dimension_semantics = [#tpu.dimension_semantics<parallel>], iteration_bounds = array<i64: 1>, scalar_prefetch = 0 : i64, scratch_operands = 0 : i64, tpu.core_type = #tpu.core_type<tc>, window_params = [{transform_indices = @transform_0, window_bounds = array<i64: 2, 36, 256>}, {pipeline_mode = #tpu.pipeline_mode<synchronous>, transform_indices = @transform_1, window_bounds = array<i64: 32, 36>}, {pipeline_mode = #tpu.pipeline_mode<synchronous>, transform_indices = @transform_2, window_bounds = array<i64: 32, 32>}, {pipeline_mode = #tpu.pipeline_mode<synchronous>, transform_indices = @transform_3, window_bounds = array<i64: 32, 1>}, {pipeline_mode = #tpu.pipeline_mode<synchronous>, transform_indices = @transform_4, window_bounds = array<i64: 32, 1>}, {transform_indices = @transform_5, window_bounds = array<i64: 2, 32, 256>}]} {
    %c0 = arith.constant 0 : index
    %c0_0 = arith.constant 0 : index
    %0 = vector.load %arg2[%c0, %c0_0] : memref<32x36xf32, #tpu.memory_space<vmem>>, vector<32x36xf32>
    %c0_1 = arith.constant 0 : index
    %c0_2 = arith.constant 0 : index
    %1 = vector.load %arg3[%c0_1, %c0_2] : memref<32x32xf32, #tpu.memory_space<vmem>>, vector<32x32xf32>
    %c0_3 = arith.constant 0 : index
    %c0_4 = arith.constant 0 : index
    %2 = vector.load %arg4[%c0_3, %c0_4] : memref<32x1xf32, #tpu.memory_space<vmem>>, vector<32x1xf32>
    %c0_5 = arith.constant 0 : index
    %c0_6 = arith.constant 0 : index
    %3 = vector.load %arg5[%c0_5, %c0_6] : memref<32x1xf32, #tpu.memory_space<vmem>>, vector<32x1xf32>
    %c0_7 = arith.constant 0 : index
    %c0_8 = arith.constant 0 : index
    %c0_9 = arith.constant 0 : index
    %4 = vector.load %arg1[%c0_7, %c0_8, %c0_9] : memref<2x36x256xf32, #tpu.memory_space<vmem>>, vector<1x36x256xf32>
    %5 = vector.shape_cast %4 : vector<1x36x256xf32> to vector<36x256xf32>
    %cst = arith.constant dense<0.000000e+00> : vector<32x256xf32>
    %6 = tpu.matmul %0, %5, %cst {dimension_numbers = #tpu.dot_dimension_numbers<[1], [0], [0], [1], [0, 0, 1, 1], [], []>} : vector<32x36xf32>, vector<36x256xf32>, vector<32x256xf32> -> vector<32x256xf32>
    %cst_10 = arith.constant dense<0.000000e+00> : vector<32xf32>
    %7 = vector.multi_reduction <add>, %6, %cst_10 [1] : vector<32x256xf32> to vector<32xf32>
    %8 = vector.shape_cast %7 : vector<32xf32> to vector<32x1xf32>
    %cst_11 = arith.constant 2.560000e+02 : f32
    %9 = vector.broadcast %cst_11 : f32 to vector<32x1xf32>
    %10 = arith.divf %8, %9 : vector<32x1xf32>
    %cst_12 = arith.constant dense<0.000000e+00> : vector<32x1xf32>
    %11 = tpu.matmul %1, %10, %cst_12 {dimension_numbers = #tpu.dot_dimension_numbers<[1], [0], [0], [1], [0, 0, 1, 1], [], []>} : vector<32x32xf32>, vector<32x1xf32>, vector<32x1xf32> -> vector<32x1xf32>
    %12 = vector.broadcast %11 : vector<32x1xf32> to vector<32x256xf32>
    %13 = arith.subf %6, %12 : vector<32x256xf32>
    %14 = arith.mulf %13, %13 : vector<32x256xf32>
    %cst_13 = arith.constant dense<0.000000e+00> : vector<32xf32>
    %15 = vector.multi_reduction <add>, %14, %cst_13 [1] : vector<32x256xf32> to vector<32xf32>
    %16 = vector.shape_cast %15 : vector<32xf32> to vector<32x1xf32>
    %cst_14 = arith.constant 2.560000e+02 : f32
    %17 = vector.broadcast %cst_14 : f32 to vector<32x1xf32>
    %18 = arith.divf %16, %17 : vector<32x1xf32>
    %cst_15 = arith.constant dense<0.000000e+00> : vector<32x1xf32>
    %19 = tpu.matmul %1, %18, %cst_15 {dimension_numbers = #tpu.dot_dimension_numbers<[1], [0], [0], [1], [0, 0, 1, 1], [], []>} : vector<32x32xf32>, vector<32x1xf32>, vector<32x1xf32> -> vector<32x1xf32>
    %cst_16 = arith.constant 9.99999974E-6 : f32
    %20 = vector.broadcast %cst_16 : f32 to vector<32x1xf32>
    %21 = arith.addf %19, %20 : vector<32x1xf32>
    %22 = math.rsqrt %21 : vector<32x1xf32>
    %23 = arith.mulf %22, %2 : vector<32x1xf32>
    %24 = vector.broadcast %23 : vector<32x1xf32> to vector<32x256xf32>
    %25 = arith.mulf %13, %24 : vector<32x256xf32>
    %26 = vector.broadcast %3 : vector<32x1xf32> to vector<32x256xf32>
    %27 = arith.addf %25, %26 : vector<32x256xf32>
    %cst_17 = arith.constant 0.000000e+00 : f32
    %28 = vector.broadcast %cst_17 : f32 to vector<32x256xf32>
    %29 = arith.maximumf %27, %28 : vector<32x256xf32>
    %c0_18 = arith.constant 0 : index
    %c0_19 = arith.constant 0 : index
    %c0_20 = arith.constant 0 : index
    %30 = vector.load %arg6[%c0_18, %c0_19, %c0_20] : memref<2x32x256xf32, #tpu.memory_space<vmem>>, vector<1x32x256xf32>
    %31 = vector.shape_cast %30 : vector<1x32x256xf32> to vector<32x256xf32>
    %32 = vector.shape_cast %29 : vector<32x256xf32> to vector<1x32x256xf32>
    tpu.vector_store %arg6[%c0_18, %c0_19, %c0_20], %32 {strides = array<i32>} : memref<2x32x256xf32, #tpu.memory_space<vmem>>, vector<1x32x256xf32>,
    %c1 = arith.constant 1 : index
    %c0_21 = arith.constant 0 : index
    %c0_22 = arith.constant 0 : index
    %33 = vector.load %arg1[%c1, %c0_21, %c0_22] : memref<2x36x256xf32, #tpu.memory_space<vmem>>, vector<1x36x256xf32>
    %34 = vector.shape_cast %33 : vector<1x36x256xf32> to vector<36x256xf32>
    %cst_23 = arith.constant dense<0.000000e+00> : vector<32x256xf32>
    %35 = tpu.matmul %0, %34, %cst_23 {dimension_numbers = #tpu.dot_dimension_numbers<[1], [0], [0], [1], [0, 0, 1, 1], [], []>} : vector<32x36xf32>, vector<36x256xf32>, vector<32x256xf32> -> vector<32x256xf32>
    %cst_24 = arith.constant dense<0.000000e+00> : vector<32xf32>
    %36 = vector.multi_reduction <add>, %35, %cst_24 [1] : vector<32x256xf32> to vector<32xf32>
    %37 = vector.shape_cast %36 : vector<32xf32> to vector<32x1xf32>
    %cst_25 = arith.constant 2.560000e+02 : f32
    %38 = vector.broadcast %cst_25 : f32 to vector<32x1xf32>
    %39 = arith.divf %37, %38 : vector<32x1xf32>
    %cst_26 = arith.constant dense<0.000000e+00> : vector<32x1xf32>
    %40 = tpu.matmul %1, %39, %cst_26 {dimension_numbers = #tpu.dot_dimension_numbers<[1], [0], [0], [1], [0, 0, 1, 1], [], []>} : vector<32x32xf32>, vector<32x1xf32>, vector<32x1xf32> -> vector<32x1xf32>
    %41 = vector.broadcast %40 : vector<32x1xf32> to vector<32x256xf32>
    %42 = arith.subf %35, %41 : vector<32x256xf32>
    %43 = arith.mulf %42, %42 : vector<32x256xf32>
    %cst_27 = arith.constant dense<0.000000e+00> : vector<32xf32>
    %44 = vector.multi_reduction <add>, %43, %cst_27 [1] : vector<32x256xf32> to vector<32xf32>
    %45 = vector.shape_cast %44 : vector<32xf32> to vector<32x1xf32>
    %cst_28 = arith.constant 2.560000e+02 : f32
    %46 = vector.broadcast %cst_28 : f32 to vector<32x1xf32>
    %47 = arith.divf %45, %46 : vector<32x1xf32>
    %cst_29 = arith.constant dense<0.000000e+00> : vector<32x1xf32>
    %48 = tpu.matmul %1, %47, %cst_29 {dimension_numbers = #tpu.dot_dimension_numbers<[1], [0], [0], [1], [0, 0, 1, 1], [], []>} : vector<32x32xf32>, vector<32x1xf32>, vector<32x1xf32> -> vector<32x1xf32>
    %cst_30 = arith.constant 9.99999974E-6 : f32
    %49 = vector.broadcast %cst_30 : f32 to vector<32x1xf32>
    %50 = arith.addf %48, %49 : vector<32x1xf32>
    %51 = math.rsqrt %50 : vector<32x1xf32>
    %52 = arith.mulf %51, %2 : vector<32x1xf32>
    %53 = vector.broadcast %52 : vector<32x1xf32> to vector<32x256xf32>
    %54 = arith.mulf %42, %53 : vector<32x256xf32>
    %55 = vector.broadcast %3 : vector<32x1xf32> to vector<32x256xf32>
    %56 = arith.addf %54, %55 : vector<32x256xf32>
    %cst_31 = arith.constant 0.000000e+00 : f32
    %57 = vector.broadcast %cst_31 : f32 to vector<32x256xf32>
    %58 = arith.maximumf %56, %57 : vector<32x256xf32>
    %c1_32 = arith.constant 1 : index
    %c0_33 = arith.constant 0 : index
    %c0_34 = arith.constant 0 : index
    %59 = vector.load %arg6[%c1_32, %c0_33, %c0_34] : memref<2x32x256xf32, #tpu.memory_space<vmem>>, vector<1x32x256xf32>
    %60 = vector.shape_cast %59 : vector<1x32x256xf32> to vector<32x256xf32>
    %61 = vector.shape_cast %58 : vector<32x256xf32> to vector<1x32x256xf32>
    tpu.vector_store %arg6[%c1_32, %c0_33, %c0_34], %61 {strides = array<i32>} : memref<2x32x256xf32, #tpu.memory_space<vmem>>, vector<1x32x256xf32>,
    return
  }
  func.func @transform_0(%arg0: i32) -> (i32, i32, i32) {
    %c0_i32 = arith.constant 0 : i32
    %c0_i32_0 = arith.constant 0 : i32
    %c0_i32_1 = arith.constant 0 : i32
    return %arg0, %c0_i32, %c0_i32_0 : i32, i32, i32
  }
  func.func @transform_1(%arg0: i32) -> (i32, i32) {
    %c0_i32 = arith.constant 0 : i32
    %c0_i32_0 = arith.constant 0 : i32
    %c0_i32_1 = arith.constant 0 : i32
    return %c0_i32, %c0_i32_0 : i32, i32
  }
  func.func @transform_2(%arg0: i32) -> (i32, i32) {
    %c0_i32 = arith.constant 0 : i32
    %c0_i32_0 = arith.constant 0 : i32
    %c0_i32_1 = arith.constant 0 : i32
    return %c0_i32, %c0_i32_0 : i32, i32
  }
  func.func @transform_3(%arg0: i32) -> (i32, i32) {
    %c0_i32 = arith.constant 0 : i32
    %c0_i32_0 = arith.constant 0 : i32
    %c0_i32_1 = arith.constant 0 : i32
    return %c0_i32, %c0_i32_0 : i32, i32
  }
  func.func @transform_4(%arg0: i32) -> (i32, i32) {
    %c0_i32 = arith.constant 0 : i32
    %c0_i32_0 = arith.constant 0 : i32
    %c0_i32_1 = arith.constant 0 : i32
    return %c0_i32, %c0_i32_0 : i32, i32
  }
  func.func @transform_5(%arg0: i32) -> (i32, i32, i32) {
    %c0_i32 = arith.constant 0 : i32
    %c0_i32_0 = arith.constant 0 : i32
    %c0_i32_1 = arith.constant 0 : i32
    return %arg0, %c0_i32, %c0_i32_0 : i32, i32, i32
  }
}

</mosaic_0001>

<llo_original>
// kernel: tpu_custom_call.1
$region0: #{tpu_custom_call.1}
  #allocation0 [shape = 'u32[]', space=smem, size = 0x4, offset = 0x4, fixed_abs, tag = 'smem constant byte address 0x4 - core index']
  #allocation1 [shape = 'u32[144,128]{1,0:T(1,128)}', space=vmem, size = 0x12000, scoped, tag = 'internal scratch']
  %s0 = inlined_call_operand.vmem [shape: f32[2,36,256], index: 0, kind: input, shape index: {}]
  %s1 = inlined_call_operand.vmem [shape: f32[32,36], index: 1, kind: input, shape index: {}]
  %s2 = inlined_call_operand.vmem [shape: f32[32,32], index: 2, kind: input, shape index: {}]
  %s3 = inlined_call_operand.vmem [shape: f32[32,1], index: 3, kind: input, shape index: {}]
  %s4 = inlined_call_operand.vmem [shape: f32[32,1], index: 4, kind: input, shape index: {}]
  %s5 = inlined_call_operand.hbm [shape: f32[2,32,256], index: 5, kind: output, shape index: {}]
  %s6 = sld [smem:[#allocation0]]
  $region30: #{tpu_custom_call.1} parent=0
    _
  %s8 = ssub.s32 1, %s6
  %s9 = scalar_select 0, %s8, %s6
  $region1: #{tpu_custom_call.1} parent=0
    #allocation2 [shape = 'u8[65536]{0}', space=vmem, size = 0x10000, scoped, tag = 'output window, operand 0, single buffered']
    #allocation3 [shape = 's32[1]{0}', space=sflag, size = 0x4, scoped, tag = 'scoped memory for tpu_custom_call.1']
    %10 = vsyncpa [#allocation3], 0
    // Predicated region
    $region2: #{tpu_custom_call.1} parent=1 // pred_check
      _
    $region3: #{tpu_custom_call.1} parent=1 // pred_check_branch
      %12 = sbr.rel (0) target = $region5
    $region4: #{tpu_custom_call.1} parent=1 // pred_region
      _
    $region5: #{tpu_custom_call.1} parent=1 // pred_fallthru
      _
    // Predicated region
    $region6: #{tpu_custom_call.1} parent=1 // pred_check
      _
    $region7: #{tpu_custom_call.1} parent=1 // pred_check_branch
      %14 = sbr.rel (0) target = $region9
    $region8: #{tpu_custom_call.1} parent=1 // pred_region
      _
    $region9: #{tpu_custom_call.1} parent=1 // pred_fallthru
      _
    // Predicated region
    $region10: #{tpu_custom_call.1} parent=1 // pred_check
      _
    $region11: #{tpu_custom_call.1} parent=1 // pred_check_branch
      %16 = sbr.rel (0) target = $region13
    $region12: #{tpu_custom_call.1} parent=1 // pred_region
      _
    $region13: #{tpu_custom_call.1} parent=1 // pred_fallthru
      _
    // Predicated region
    $region14: #{tpu_custom_call.1} parent=1 // pred_check
      _
    $region15: #{tpu_custom_call.1} parent=1 // pred_check_branch
      %18 = sbr.rel (0) target = $region17
    $region16: #{tpu_custom_call.1} parent=1 // pred_region
      _
    $region17: #{tpu_custom_call.1} parent=1 // pred_fallthru
      _
    // Predicated region
    $region18: #{tpu_custom_call.1} parent=1 // pred_check
      _
    $region19: #{tpu_custom_call.1} parent=1 // pred_check_branch
      %20 = sbr.rel (0) target = $region21
    $region20: #{tpu_custom_call.1} parent=1 // pred_region
      _
    $region21: #{tpu_custom_call.1} parent=1 // pred_fallthru
      _
    %v21 = vld [vmem:[%s1] sm:$0xff]
    %v22 = vld [vmem:[%s1 + $0x8] sm:$0xff]
    %v23 = vld [vmem:[%s1 + $0x10] sm:$0xff]
    %v24 = vld [vmem:[%s1 + $0x18] sm:$0xff]
    %v25 = vld [vmem:[%s2] sm:$0xff]
    %v26 = vld [vmem:[%s2 + $0x8] sm:$0xff]
    %v27 = vld [vmem:[%s2 + $0x10] sm:$0xff]
    %v28 = vld [vmem:[%s2 + $0x18] sm:$0xff]
    %v29 = vld [vmem:[%s3] sm:$0xff]
    %v30 = vld [vmem:[%s3 + $0x8] sm:$0xff]
    %v31 = vld [vmem:[%s3 + $0x10] sm:$0xff]
    %v32 = vld [vmem:[%s3 + $0x18] sm:$0xff]
    %v33 = vld [vmem:[%s4] sm:$0xff]
    %v34 = vld [vmem:[%s4 + $0x8] sm:$0xff]
    %v35 = vld [vmem:[%s4 + $0x10] sm:$0xff]
    %v36 = vld [vmem:[%s4 + $0x18] sm:$0xff]
    %v37 = vld [vmem:[%s0] sm:$0xff]
    %v38 = vld [vmem:[%s0 + $0x8] sm:$0xff]
    %v39 = vld [vmem:[%s0 + $0x10] sm:$0xff]
    %v40 = vld [vmem:[%s0 + $0x18] sm:$0xff]
    %v41 = vld [vmem:[%s0 + $0x20] sm:$0xff]
    %v42 = vld [vmem:[%s0 + $0x28] sm:$0xff]
    %v43 = vld [vmem:[%s0 + $0x30] sm:$0xff]
    %v44 = vld [vmem:[%s0 + $0x38] sm:$0xff]
    %v45 = vld [vmem:[%s0 + $0x40] sm:$0xf]
    %v46 = vld [vmem:[%s0 + $0x48] sm:$0xf]
    %vm47 = vcmask 293888
    %v49 = vsel %vm47, %v21, 0
    %v52 = vsel %vm47, %v22, 0
    %v55 = vsel %vm47, %v23, 0
    %v58 = vsel %vm47, %v24, 0
    %vm60 = vcmask 1043456
    %v62 = vsel %vm60, %v45, 0
    %v65 = vsel %vm60, %v46, 0
    %67 = vmatprep.subr.mxu0 0.0
    %68 = vmatpush1.msra.mxu0 0.0
    %69 = vmatprep.subr.mxu0 0.0
    %70 = vmatpush1.msra.mxu0 0.0
    %71 = vmatprep.subr.mxu0 0.0
    %72 = vmatpush1.msra.mxu0 0.0
    %73 = vmatprep.subr.mxu0 0.0
    %74 = vmatpush1.msra.mxu0 0.0
    %75 = vmatprep.subr.mxu0 0.0
    %76 = vmatpush1.msra.mxu0 0.0
    %77 = vmatprep.subr.mxu0 0.0
    %78 = vmatpush1.msra.mxu0 0.0
    %79 = vmatprep.subr.mxu0 0.0
    %80 = vmatpush1.msra.mxu0 0.0
    %81 = vmatprep.subr.mxu0 0.0
    %82 = vmatpush1.msra.mxu0 0.0
    %83 = vmatprep.subr.mxu0 0.0
    %84 = vmatpush1.msra.mxu0 0.0
    %85 = vmatprep.subr.mxu0 0.0
    %86 = vmatpush1.msra.mxu0 0.0
    %87 = vmatprep.subr.mxu0 0.0
    %88 = vmatpush1.msra.mxu0 0.0
    %89 = vmatprep.subr.mxu0 %v65
    %90 = vmatpush1.msra.mxu0 %v62
    %91 = vmatprep.subr.mxu0 %v44
    %92 = vmatpush1.msra.mxu0 %v43
    %93 = vmatprep.subr.mxu0 %v42
    %94 = vmatpush1.msra.mxu0 %v41
    %95 = vmatprep.subr.mxu0 %v40
    %96 = vmatpush1.msra.mxu0 %v39
    %97 = vmatprep.subr.mxu0 %v38
    %98 = vmatpush1.msra.mxu0 %v37
    %99 = vmatprep.subr.mxu0 0.0
    %100 = vmatpush2.msra.mxu0 0.0
    %101 = vmatprep.subr.mxu0 0.0
    %102 = vmatpush2.msra.mxu0 0.0
    %103 = vmatprep.subr.mxu0 0.0
    %104 = vmatpush2.msra.mxu0 0.0
    %105 = vmatprep.subr.mxu0 0.0
    %106 = vmatpush2.msra.mxu0 0.0
    %107 = vmatprep.subr.mxu0 0.0
    %108 = vmatpush2.msra.mxu0 0.0
    %109 = vmatprep.subr.mxu0 0.0
    %110 = vmatpush2.msra.mxu0 0.0
    %111 = vmatprep.subr.mxu0 0.0
    %112 = vmatpush2.msra.mxu0 0.0
    %113 = vmatprep.subr.mxu0 0.0
    %114 = vmatpush2.msra.mxu0 0.0
    %115 = vmatprep.subr.mxu0 0.0
    %116 = vmatpush2.msra.mxu0 0.0
    %117 = vmatprep.subr.mxu0 0.0
    %118 = vmatpush2.msra.mxu0 0.0
    %119 = vmatprep.subr.mxu0 0.0
    %120 = vmatpush2.msra.mxu0 0.0
    %121 = vmatprep.subr.mxu0 0.0
    %122 = vmatpush2.msra.mxu0 0.0
    %123 = vmatprep.subr.mxu0 0.0
    %124 = vmatpush2.msra.mxu0 0.0
    %125 = vmatprep.subr.mxu0 0.0
    %126 = vmatpush2.msra.mxu0 0.0
    %127 = vmatprep.subr.mxu0 0.0
    %128 = vmatpush2.msra.mxu0 0.0
    %129 = vmatprep.subr.mxu0 0.0
    %130 = vmatpush2.msra.mxu0 0.0
    %131 = vmatprep.mubr.f32.mxu0 0.0
    %132 = vmatmul.mubr.f32.gmra.mxu0 %v49
    %v133 = vpop.f32.mrf.mxu0
    %v134 = vadd.f32 0.0, %v133
    %v135 = vpop.f32.mrf.mxu0
    %v136 = vadd.f32 0.0, %v135
    %137 = vmatprep.mubr.f32.mxu0 0.0
    %138 = vmatmul.mubr.f32.gmra.mxu0 %v52
    %v139 = vpop.f32.mrf.mxu0
    %v140 = vadd.f32 0.0, %v139
    %v141 = vpop.f32.mrf.mxu0
    %v142 = vadd.f32 0.0, %v141
    %143 = vmatprep.mubr.f32.mxu0 0.0
    %144 = vmatmul.mubr.f32.gmra.mxu0 %v55
    %v145 = vpop.f32.mrf.mxu0
    %v146 = vadd.f32 0.0, %v145
    %v147 = vpop.f32.mrf.mxu0
    %v148 = vadd.f32 0.0, %v147
    %149 = vmatprep.mubr.f32.mxu0 0.0
    %150 = vmatmul.mubr.f32.gmra.mxu0 %v58
    %v151 = vpop.f32.mrf.mxu0
    %v152 = vadd.f32 0.0, %v151
    %v153 = vpop.f32.mrf.mxu0
    %v154 = vadd.f32 0.0, %v153
    %155 = vdwg.mxu0
    %v156 = vadd.f32 %v134, %v136
    %157 = vadd.xlane.f32.xlu0 %v156
    %v158 = vpop.xlane.xlu0 %157
    %v159 = vadd.f32 %v140, %v142
    %160 = vadd.xlane.f32.xlu0 %v159
    %v161 = vpop.xlane.xlu0 %160
    %v162 = vadd.f32 %v146, %v148
    %163 = vadd.xlane.f32.xlu0 %v162
    %v164 = vpop.xlane.xlu0 %163
    %v165 = vadd.f32 %v152, %v154
    %166 = vadd.xlane.f32.xlu0 %v165
    %v167 = vpop.xlane.xlu0 %166
    %v168 = vrcp.pop 256.0
    %v169 = vmul.f32 %v158, %v168
    %v170 = vmul.f32 %v161, %v168
    %v171 = vmul.f32 %v164, %v168
    %v172 = vmul.f32 %v167, %v168
    %vm173 = vcmask 261120
    %v175 = vsel %vm173, %v25, 0
    %v178 = vsel %vm173, %v26, 0
    %v181 = vsel %vm173, %v27, 0
    %v184 = vsel %vm173, %v28, 0
    %186 = vmatprep.subr.mxu0 0.0
    %187 = vmatpush1.msra.mxu0 0.0
    %188 = vmatprep.subr.mxu0 0.0
    %189 = vmatpush1.msra.mxu0 0.0
    %190 = vmatprep.subr.mxu0 0.0
    %191 = vmatpush1.msra.mxu0 0.0
    %192 = vmatprep.subr.mxu0 0.0
    %193 = vmatpush1.msra.mxu0 0.0
    %194 = vmatprep.subr.mxu0 0.0
    %195 = vmatpush1.msra.mxu0 0.0
    %196 = vmatprep.subr.mxu0 0.0
    %197 = vmatpush1.msra.mxu0 0.0
    %198 = vmatprep.subr.mxu0 0.0
    %199 = vmatpush1.msra.mxu0 0.0
    %200 = vmatprep.subr.mxu0 0.0
    %201 = vmatpush1.msra.mxu0 0.0
    %202 = vmatprep.subr.mxu0 0.0
    %203 = vmatpush1.msra.mxu0 0.0
    %204 = vmatprep.subr.mxu0 0.0
    %205 = vmatpush1.msra.mxu0 0.0
    %206 = vmatprep.subr.mxu0 0.0
    %207 = vmatpush1.msra.mxu0 0.0
    %208 = vmatprep.subr.mxu0 0.0
    %209 = vmatpush1.msra.mxu0 0.0
    %210 = vmatprep.subr.mxu0 0.0
    %211 = vmatpush1.msra.mxu0 %v172
    %212 = vmatprep.subr.mxu0 0.0
    %213 = vmatpush1.msra.mxu0 %v171
    %214 = vmatprep.subr.mxu0 0.0
    %215 = vmatpush1.msra.mxu0 %v170
    %216 = vmatprep.subr.mxu0 0.0
    %217 = vmatpush1.msra.mxu0 %v169
    %218 = vmatprep.subr.mxu0 0.0
    %219 = vmatpush2.msra.mxu0 0.0
    %220 = vmatprep.subr.mxu0 0.0
    %221 = vmatpush2.msra.mxu0 0.0
    %222 = vmatprep.subr.mxu0 0.0
    %223 = vmatpush2.msra.mxu0 0.0
    %224 = vmatprep.subr.mxu0 0.0
    %225 = vmatpush2.msra.mxu0 0.0
    %226 = vmatprep.subr.mxu0 0.0
    %227 = vmatpush2.msra.mxu0 0.0
    %228 = vmatprep.subr.mxu0 0.0
    %229 = vmatpush2.msra.mxu0 0.0
    %230 = vmatprep.subr.mxu0 0.0
    %231 = vmatpush2.msra.mxu0 0.0
    %232 = vmatprep.subr.mxu0 0.0
    %233 = vmatpush2.msra.mxu0 0.0
    %234 = vmatprep.subr.mxu0 0.0
    %235 = vmatpush2.msra.mxu0 0.0
    %236 = vmatprep.subr.mxu0 0.0
    %237 = vmatpush2.msra.mxu0 0.0
    %238 = vmatprep.subr.mxu0 0.0
    %239 = vmatpush2.msra.mxu0 0.0
    %240 = vmatprep.subr.mxu0 0.0
    %241 = vmatpush2.msra.mxu0 0.0
    %242 = vmatprep.subr.mxu0 0.0
    %243 = vmatpush2.msra.mxu0 0.0
    %244 = vmatprep.subr.mxu0 0.0
    %245 = vmatpush2.msra.mxu0 0.0
    %246 = vmatprep.subr.mxu0 0.0
    %247 = vmatpush2.msra.mxu0 0.0
    %248 = vmatprep.subr.mxu0 0.0
    %249 = vmatpush2.msra.mxu0 0.0
    %250 = vmatprep.mubr.f32.mxu0 0.0
    %251 = vmatmul.mubr.f32.gmra.mxu0 %v175
    %v252 = vpop.f32.mrf.mxu0
    %v253 = vadd.f32 0.0, %v252
    %v254 = vpop.f32.mrf.mxu0
    %255 = vmatprep.mubr.f32.mxu0 0.0
    %256 = vmatmul.mubr.f32.gmra.mxu0 %v178
    %v257 = vpop.f32.mrf.mxu0
    %v258 = vadd.f32 0.0, %v257
    %v259 = vpop.f32.mrf.mxu0
    %260 = vmatprep.mubr.f32.mxu0 0.0
    %261 = vmatmul.mubr.f32.gmra.mxu0 %v181
    %v262 = vpop.f32.mrf.mxu0
    %v263 = vadd.f32 0.0, %v262
    %v264 = vpop.f32.mrf.mxu0
    %265 = vmatprep.mubr.f32.mxu0 0.0
    %266 = vmatmul.mubr.f32.gmra.mxu0 %v184
    %v267 = vpop.f32.mrf.mxu0
    %v268 = vadd.f32 0.0, %v267
    %v269 = vpop.f32.mrf.mxu0
    %270 = vdwg.mxu0
    %272 = vset.pattern.permute.xlu0 0
    %273 = vperm.xlu0 %272, %v253
    %v274 = vpop.permute.xlu0 %273
    %277 = vset.pattern.permute.xlu0 0
    %278 = vperm.xlu0 %277, %v258
    %v279 = vpop.permute.xlu0 %278
    %282 = vset.pattern.permute.xlu0 0
    %283 = vperm.xlu0 %282, %v263
    %v284 = vpop.permute.xlu0 %283
    %287 = vset.pattern.permute.xlu0 0
    %288 = vperm.xlu0 %287, %v268
    %v289 = vpop.permute.xlu0 %288
    %v291 = vsub.f32 %v134, %v274
    %v292 = vsub.f32 %v136, %v274
    %v293 = vsub.f32 %v140, %v279
    %v294 = vsub.f32 %v142, %v279
    %v295 = vsub.f32 %v146, %v284
    %v296 = vsub.f32 %v148, %v284
    %v297 = vsub.f32 %v152, %v289
    %v298 = vsub.f32 %v154, %v289
    %v299 = vmul.f32 %v291, %v291
    %v300 = vmul.f32 %v292, %v292
    %v301 = vmul.f32 %v293, %v293
    %v302 = vmul.f32 %v294, %v294
    %v303 = vmul.f32 %v295, %v295
    %v304 = vmul.f32 %v296, %v296
    %v305 = vmul.f32 %v297, %v297
    %v306 = vmul.f32 %v298, %v298
    %v307 = vadd.f32 %v299, %v300
    %308 = vadd.xlane.f32.xlu0 %v307
    %v309 = vpop.xlane.xlu0 %308
    %v310 = vadd.f32 %v301, %v302
    %311 = vadd.xlane.f32.xlu0 %v310
    %v312 = vpop.xlane.xlu0 %311
    %v313 = vadd.f32 %v303, %v304
    %314 = vadd.xlane.f32.xlu0 %v313
    %v315 = vpop.xlane.xlu0 %314
    %v316 = vadd.f32 %v305, %v306
    %317 = vadd.xlane.f32.xlu0 %v316
    %v318 = vpop.xlane.xlu0 %317
    %v319 = vmul.f32 %v309, %v168
    %v320 = vmul.f32 %v312, %v168
    %v321 = vmul.f32 %v315, %v168
    %v322 = vmul.f32 %v318, %v168
    %323 = vmatprep.subr.mxu0 0.0
    %324 = vmatpush1.msra.mxu0 0.0
    %325 = vmatprep.subr.mxu0 0.0
    %326 = vmatpush1.msra.mxu0 0.0
    %327 = vmatprep.subr.mxu0 0.0
    %328 = vmatpush1.msra.mxu0 0.0
    %329 = vmatprep.subr.mxu0 0.0
    %330 = vmatpush1.msra.mxu0 0.0
    %331 = vmatprep.subr.mxu0 0.0
    %332 = vmatpush1.msra.mxu0 0.0
    %333 = vmatprep.subr.mxu0 0.0
    %334 = vmatpush1.msra.mxu0 0.0
    %335 = vmatprep.subr.mxu0 0.0
    %336 = vmatpush1.msra.mxu0 0.0
    %337 = vmatprep.subr.mxu0 0.0
    %338 = vmatpush1.msra.mxu0 0.0
    %339 = vmatprep.subr.mxu0 0.0
    %340 = vmatpush1.msra.mxu0 0.0
    %341 = vmatprep.subr.mxu0 0.0
    %342 = vmatpush1.msra.mxu0 0.0
    %343 = vmatprep.subr.mxu0 0.0
    %344 = vmatpush1.msra.mxu0 0.0
    %345 = vmatprep.subr.mxu0 0.0
    %346 = vmatpush1.msra.mxu0 0.0
    %347 = vmatprep.subr.mxu0 0.0
    %348 = vmatpush1.msra.mxu0 %v322
    %349 = vmatprep.subr.mxu0 0.0
    %350 = vmatpush1.msra.mxu0 %v321
    %351 = vmatprep.subr.mxu0 0.0
    %352 = vmatpush1.msra.mxu0 %v320
    %353 = vmatprep.subr.mxu0 0.0
    %354 = vmatpush1.msra.mxu0 %v319
    %355 = vmatprep.subr.mxu0 0.0
    %356 = vmatpush2.msra.mxu0 0.0
    %357 = vmatprep.subr.mxu0 0.0
    %358 = vmatpush2.msra.mxu0 0.0
    %359 = vmatprep.subr.mxu0 0.0
    %360 = vmatpush2.msra.mxu0 0.0
    %361 = vmatprep.subr.mxu0 0.0
    %362 = vmatpush2.msra.mxu0 0.0
    %363 = vmatprep.subr.mxu0 0.0
    %364 = vmatpush2.msra.mxu0 0.0
    %365 = vmatprep.subr.mxu0 0.0
    %366 = vmatpush2.msra.mxu0 0.0
    %367 = vmatprep.subr.mxu0 0.0
    %368 = vmatpush2.msra.mxu0 0.0
    %369 = vmatprep.subr.mxu0 0.0
    %370 = vmatpush2.msra.mxu0 0.0
    %371 = vmatprep.subr.mxu0 0.0
    %372 = vmatpush2.msra.mxu0 0.0
    %373 = vmatprep.subr.mxu0 0.0
    %374 = vmatpush2.msra.mxu0 0.0
    %375 = vmatprep.subr.mxu0 0.0
    %376 = vmatpush2.msra.mxu0 0.0
    %377 = vmatprep.subr.mxu0 0.0
    %378 = vmatpush2.msra.mxu0 0.0
    %379 = vmatprep.subr.mxu0 0.0
    %380 = vmatpush2.msra.mxu0 0.0
    %381 = vmatprep.subr.mxu0 0.0
    %382 = vmatpush2.msra.mxu0 0.0
    %383 = vmatprep.subr.mxu0 0.0
    %384 = vmatpush2.msra.mxu0 0.0
    %385 = vmatprep.subr.mxu0 0.0
    %386 = vmatpush2.msra.mxu0 0.0
    %387 = vmatprep.mubr.f32.mxu0 0.0
    %388 = vmatmul.mubr.f32.gmra.mxu0 %v175
    %v389 = vpop.f32.mrf.mxu0
    %v390 = vadd.f32 1e-05, %v389
    %v391 = vpop.f32.mrf.mxu0
    %392 = vmatprep.mubr.f32.mxu0 0.0
    %393 = vmatmul.mubr.f32.gmra.mxu0 %v178
    %v394 = vpop.f32.mrf.mxu0
    %v395 = vadd.f32 1e-05, %v394
    %v396 = vpop.f32.mrf.mxu0
    %397 = vmatprep.mubr.f32.mxu0 0.0
    %398 = vmatmul.mubr.f32.gmra.mxu0 %v181
    %v399 = vpop.f32.mrf.mxu0
    %v400 = vadd.f32 1e-05, %v399
    %v401 = vpop.f32.mrf.mxu0
    %402 = vmatprep.mubr.f32.mxu0 0.0
    %403 = vmatmul.mubr.f32.gmra.mxu0 %v184
    %v404 = vpop.f32.mrf.mxu0
    %v405 = vadd.f32 1e-05, %v404
    %v406 = vpop.f32.mrf.mxu0
    %407 = vdwg.mxu0
    %v408 = vrsqrt.pop %v390
    %v409 = vrsqrt.pop %v395
    %v410 = vrsqrt.pop %v400
    %v411 = vrsqrt.pop %v405
    %v412 = vmul.f32 %v408, %v29
    %v413 = vmul.f32 %v409, %v30
    %v414 = vmul.f32 %v410, %v31
    %v415 = vmul.f32 %v411, %v32
    %417 = vset.pattern.permute.xlu0 0
    %418 = vperm.xlu0 %417, %v412
    %v419 = vpop.permute.xlu0 %418
    %422 = vset.pattern.permute.xlu0 0
    %423 = vperm.xlu0 %422, %v413
    %v424 = vpop.permute.xlu0 %423
    %427 = vset.pattern.permute.xlu0 0
    %428 = vperm.xlu0 %427, %v414
    %v429 = vpop.permute.xlu0 %428
    %432 = vset.pattern.permute.xlu0 0
    %433 = vperm.xlu0 %432, %v415
    %v434 = vpop.permute.xlu0 %433
    %v436 = vmul.f32 %v291, %v419
    %v437 = vmul.f32 %v292, %v419
    %v438 = vmul.f32 %v293, %v424
    %v439 = vmul.f32 %v294, %v424
    %v440 = vmul.f32 %v295, %v429
    %v441 = vmul.f32 %v296, %v429
    %v442 = vmul.f32 %v297, %v434
    %v443 = vmul.f32 %v298, %v434
    %445 = vset.pattern.permute.xlu0 0
    %446 = vperm.xlu0 %445, %v33
    %v447 = vpop.permute.xlu0 %446
    %450 = vset.pattern.permute.xlu0 0
    %451 = vperm.xlu0 %450, %v34
    %v452 = vpop.permute.xlu0 %451
    %455 = vset.pattern.permute.xlu0 0
    %456 = vperm.xlu0 %455, %v35
    %v457 = vpop.permute.xlu0 %456
    %460 = vset.pattern.permute.xlu0 0
    %461 = vperm.xlu0 %460, %v36
    %v462 = vpop.permute.xlu0 %461
    %v464 = vadd.f32 %v436, %v447
    %v465 = vadd.f32 %v437, %v447
    %v466 = vadd.f32 %v438, %v452
    %v467 = vadd.f32 %v439, %v452
    %v468 = vadd.f32 %v440, %v457
    %v469 = vadd.f32 %v441, %v457
    %v470 = vadd.f32 %v442, %v462
    %v471 = vadd.f32 %v443, %v462
    %v472 = vmax.f32 %v464, 0.0
    %v473 = vmax.f32 %v465, 0.0
    %v474 = vmax.f32 %v466, 0.0
    %v475 = vmax.f32 %v467, 0.0
    %v476 = vmax.f32 %v468, 0.0
    %v477 = vmax.f32 %v469, 0.0
    %v478 = vmax.f32 %v470, 0.0
    %v479 = vmax.f32 %v471, 0.0
    %480 = vst [vmem:[#allocation2] sm:$0xff] %v472
    %481 = vst [vmem:[#allocation2 + $0x8] sm:$0xff] %v473
    %482 = vst [vmem:[#allocation2 + $0x10] sm:$0xff] %v474
    %483 = vst [vmem:[#allocation2 + $0x18] sm:$0xff] %v475
    %484 = vst [vmem:[#allocation2 + $0x20] sm:$0xff] %v476
    %485 = vst [vmem:[#allocation2 + $0x28] sm:$0xff] %v477
    %486 = vst [vmem:[#allocation2 + $0x30] sm:$0xff] %v478
    %487 = vst [vmem:[#allocation2 + $0x38] sm:$0xff] %v479
    %s488 = scalar_lea.vmem %s0, 80
    %v489 = vld [vmem:[%s488] sm:$0xff]
    %v490 = vld [vmem:[%s488 + $0x8] sm:$0xff]
    %v491 = vld [vmem:[%s488 + $0x10] sm:$0xff]
    %v492 = vld [vmem:[%s488 + $0x18] sm:$0xff]
    %v493 = vld [vmem:[%s488 + $0x20] sm:$0xff]
    %v494 = vld [vmem:[%s488 + $0x28] sm:$0xff]
    %v495 = vld [vmem:[%s488 + $0x30] sm:$0xff]
    %v496 = vld [vmem:[%s488 + $0x38] sm:$0xff]
    %v497 = vld [vmem:[%s488 + $0x40] sm:$0xf]
    %v498 = vld [vmem:[%s488 + $0x48] sm:$0xf]
    %v500 = vsel %vm60, %v497, 0
    %v503 = vsel %vm60, %v498, 0
    %505 = vmatprep.subr.mxu0 0.0
    %506 = vmatpush1.msra.mxu0 0.0
    %507 = vmatprep.subr.mxu0 0.0
    %508 = vmatpush1.msra.mxu0 0.0
    %509 = vmatprep.subr.mxu0 0.0
    %510 = vmatpush1.msra.mxu0 0.0
    %511 = vmatprep.subr.mxu0 0.0
    %512 = vmatpush1.msra.mxu0 0.0
    %513 = vmatprep.subr.mxu0 0.0
    %514 = vmatpush1.msra.mxu0 0.0
    %515 = vmatprep.subr.mxu0 0.0
    %516 = vmatpush1.msra.mxu0 0.0
    %517 = vmatprep.subr.mxu0 0.0
    %518 = vmatpush1.msra.mxu0 0.0
    %519 = vmatprep.subr.mxu0 0.0
    %520 = vmatpush1.msra.mxu0 0.0
    %521 = vmatprep.subr.mxu0 0.0
    %522 = vmatpush1.msra.mxu0 0.0
    %523 = vmatprep.subr.mxu0 0.0
    %524 = vmatpush1.msra.mxu0 0.0
    %525 = vmatprep.subr.mxu0 0.0
    %526 = vmatpush1.msra.mxu0 0.0
    %527 = vmatprep.subr.mxu0 %v503
    %528 = vmatpush1.msra.mxu0 %v500
    %529 = vmatprep.subr.mxu0 %v496
    %530 = vmatpush1.msra.mxu0 %v495
    %531 = vmatprep.subr.mxu0 %v494
    %532 = vmatpush1.msra.mxu0 %v493
    %533 = vmatprep.subr.mxu0 %v492
    %534 = vmatpush1.msra.mxu0 %v491
    %535 = vmatprep.subr.mxu0 %v490
    %536 = vmatpush1.msra.mxu0 %v489
    %537 = vmatprep.subr.mxu0 0.0
    %538 = vmatpush2.msra.mxu0 0.0
    %539 = vmatprep.subr.mxu0 0.0
    %540 = vmatpush2.msra.mxu0 0.0
    %541 = vmatprep.subr.mxu0 0.0
    %542 = vmatpush2.msra.mxu0 0.0
    %543 = vmatprep.subr.mxu0 0.0
    %544 = vmatpush2.msra.mxu0 0.0
    %545 = vmatprep.subr.mxu0 0.0
    %546 = vmatpush2.msra.mxu0 0.0
    %547 = vmatprep.subr.mxu0 0.0
    %548 = vmatpush2.msra.mxu0 0.0
    %549 = vmatprep.subr.mxu0 0.0
    %550 = vmatpush2.msra.mxu0 0.0
    %551 = vmatprep.subr.mxu0 0.0
    %552 = vmatpush2.msra.mxu0 0.0
    %553 = vmatprep.subr.mxu0 0.0
    %554 = vmatpush2.msra.mxu0 0.0
    %555 = vmatprep.subr.mxu0 0.0
    %556 = vmatpush2.msra.mxu0 0.0
    %557 = vmatprep.subr.mxu0 0.0
    %558 = vmatpush2.msra.mxu0 0.0
    %559 = vmatprep.subr.mxu0 0.0
    %560 = vmatpush2.msra.mxu0 0.0
    %561 = vmatprep.subr.mxu0 0.0
    %562 = vmatpush2.msra.mxu0 0.0
    %563 = vmatprep.subr.mxu0 0.0
    %564 = vmatpush2.msra.mxu0 0.0
    %565 = vmatprep.subr.mxu0 0.0
    %566 = vmatpush2.msra.mxu0 0.0
    %567 = vmatprep.subr.mxu0 0.0
    %568 = vmatpush2.msra.mxu0 0.0
    %569 = vmatprep.mubr.f32.mxu0 0.0
    %570 = vmatmul.mubr.f32.gmra.mxu0 %v49
    %v571 = vpop.f32.mrf.mxu0
    %v572 = vadd.f32 0.0, %v571
    %v573 = vpop.f32.mrf.mxu0
    %v574 = vadd.f32 0.0, %v573
    %575 = vmatprep.mubr.f32.mxu0 0.0
    %576 = vmatmul.mubr.f32.gmra.mxu0 %v52
    %v577 = vpop.f32.mrf.mxu0
    %v578 = vadd.f32 0.0, %v577
    %v579 = vpop.f32.mrf.mxu0
    %v580 = vadd.f32 0.0, %v579
    %581 = vmatprep.mubr.f32.mxu0 0.0
    %582 = vmatmul.mubr.f32.gmra.mxu0 %v55
    %v583 = vpop.f32.mrf.mxu0
    %v584 = vadd.f32 0.0, %v583
    %v585 = vpop.f32.mrf.mxu0
    %v586 = vadd.f32 0.0, %v585
    %587 = vmatprep.mubr.f32.mxu0 0.0
    %588 = vmatmul.mubr.f32.gmra.mxu0 %v58
    %v589 = vpop.f32.mrf.mxu0
    %v590 = vadd.f32 0.0, %v589
    %v591 = vpop.f32.mrf.mxu0
    %v592 = vadd.f32 0.0, %v591
    %593 = vdwg.mxu0
    %v594 = vadd.f32 %v572, %v574
    %595 = vadd.xlane.f32.xlu0 %v594
    %v596 = vpop.xlane.xlu0 %595
    %v597 = vadd.f32 %v578, %v580
    %598 = vadd.xlane.f32.xlu0 %v597
    %v599 = vpop.xlane.xlu0 %598
    %v600 = vadd.f32 %v584, %v586
    %601 = vadd.xlane.f32.xlu0 %v600
    %v602 = vpop.xlane.xlu0 %601
    %v603 = vadd.f32 %v590, %v592
    %604 = vadd.xlane.f32.xlu0 %v603
    %v605 = vpop.xlane.xlu0 %604
    %v606 = vmul.f32 %v596, %v168
    %v607 = vmul.f32 %v599, %v168
    %v608 = vmul.f32 %v602, %v168
    %v609 = vmul.f32 %v605, %v168
    %610 = vmatprep.subr.mxu0 0.0
    %611 = vmatpush1.msra.mxu0 0.0
    %612 = vmatprep.subr.mxu0 0.0
    %613 = vmatpush1.msra.mxu0 0.0
    %614 = vmatprep.subr.mxu0 0.0
    %615 = vmatpush1.msra.mxu0 0.0
    %616 = vmatprep.subr.mxu0 0.0
    %617 = vmatpush1.msra.mxu0 0.0
    %618 = vmatprep.subr.mxu0 0.0
    %619 = vmatpush1.msra.mxu0 0.0
    %620 = vmatprep.subr.mxu0 0.0
    %621 = vmatpush1.msra.mxu0 0.0
    %622 = vmatprep.subr.mxu0 0.0
    %623 = vmatpush1.msra.mxu0 0.0
    %624 = vmatprep.subr.mxu0 0.0
    %625 = vmatpush1.msra.mxu0 0.0
    %626 = vmatprep.subr.mxu0 0.0
    %627 = vmatpush1.msra.mxu0 0.0
    %628 = vmatprep.subr.mxu0 0.0
    %629 = vmatpush1.msra.mxu0 0.0
    %630 = vmatprep.subr.mxu0 0.0
    %631 = vmatpush1.msra.mxu0 0.0
    %632 = vmatprep.subr.mxu0 0.0
    %633 = vmatpush1.msra.mxu0 0.0
    %634 = vmatprep.subr.mxu0 0.0
    %635 = vmatpush1.msra.mxu0 %v609
    %636 = vmatprep.subr.mxu0 0.0
    %637 = vmatpush1.msra.mxu0 %v608
    %638 = vmatprep.subr.mxu0 0.0
    %639 = vmatpush1.msra.mxu0 %v607
    %640 = vmatprep.subr.mxu0 0.0
    %641 = vmatpush1.msra.mxu0 %v606
    %642 = vmatprep.subr.mxu0 0.0
    %643 = vmatpush2.msra.mxu0 0.0
    %644 = vmatprep.subr.mxu0 0.0
    %645 = vmatpush2.msra.mxu0 0.0
    %646 = vmatprep.subr.mxu0 0.0
    %647 = vmatpush2.msra.mxu0 0.0
    %648 = vmatprep.subr.mxu0 0.0
    %649 = vmatpush2.msra.mxu0 0.0
    %650 = vmatprep.subr.mxu0 0.0
    %651 = vmatpush2.msra.mxu0 0.0
    %652 = vmatprep.subr.mxu0 0.0
    %653 = vmatpush2.msra.mxu0 0.0
    %654 = vmatprep.subr.mxu0 0.0
    %655 = vmatpush2.msra.mxu0 0.0
    %656 = vmatprep.subr.mxu0 0.0
    %657 = vmatpush2.msra.mxu0 0.0
    %658 = vmatprep.subr.mxu0 0.0
    %659 = vmatpush2.msra.mxu0 0.0
    %660 = vmatprep.subr.mxu0 0.0
    %661 = vmatpush2.msra.mxu0 0.0
    %662 = vmatprep.subr.mxu0 0.0
    %663 = vmatpush2.msra.mxu0 0.0
    %664 = vmatprep.subr.mxu0 0.0
    %665 = vmatpush2.msra.mxu0 0.0
    %666 = vmatprep.subr.mxu0 0.0
    %667 = vmatpush2.msra.mxu0 0.0
    %668 = vmatprep.subr.mxu0 0.0
    %669 = vmatpush2.msra.mxu0 0.0
    %670 = vmatprep.subr.mxu0 0.0
    %671 = vmatpush2.msra.mxu0 0.0
    %672 = vmatprep.subr.mxu0 0.0
    %673 = vmatpush2.msra.mxu0 0.0
    %674 = vmatprep.mubr.f32.mxu0 0.0
    %675 = vmatmul.mubr.f32.gmra.mxu0 %v175
    %v676 = vpop.f32.mrf.mxu0
    %v677 = vadd.f32 0.0, %v676
    %v678 = vpop.f32.mrf.mxu0
    %679 = vmatprep.mubr.f32.mxu0 0.0
    %680 = vmatmul.mubr.f32.gmra.mxu0 %v178
    %v681 = vpop.f32.mrf.mxu0
    %v682 = vadd.f32 0.0, %v681
    %v683 = vpop.f32.mrf.mxu0
    %684 = vmatprep.mubr.f32.mxu0 0.0
    %685 = vmatmul.mubr.f32.gmra.mxu0 %v181
    %v686 = vpop.f32.mrf.mxu0
    %v687 = vadd.f32 0.0, %v686
    %v688 = vpop.f32.mrf.mxu0
    %689 = vmatprep.mubr.f32.mxu0 0.0
    %690 = vmatmul.mubr.f32.gmra.mxu0 %v184
    %v691 = vpop.f32.mrf.mxu0
    %v692 = vadd.f32 0.0, %v691
    %v693 = vpop.f32.mrf.mxu0
    %694 = vdwg.mxu0
    %696 = vset.pattern.permute.xlu0 0
    %697 = vperm.xlu0 %696, %v677
    %v698 = vpop.permute.xlu0 %697
    %701 = vset.pattern.permute.xlu0 0
    %702 = vperm.xlu0 %701, %v682
    %v703 = vpop.permute.xlu0 %702
    %706 = vset.pattern.permute.xlu0 0
    %707 = vperm.xlu0 %706, %v687
    %v708 = vpop.permute.xlu0 %707
    %711 = vset.pattern.permute.xlu0 0
    %712 = vperm.xlu0 %711, %v692
    %v713 = vpop.permute.xlu0 %712
    %v715 = vsub.f32 %v572, %v698
    %v716 = vsub.f32 %v574, %v698
    %v717 = vsub.f32 %v578, %v703
    %v718 = vsub.f32 %v580, %v703
    %v719 = vsub.f32 %v584, %v708
    %v720 = vsub.f32 %v586, %v708
    %v721 = vsub.f32 %v590, %v713
    %v722 = vsub.f32 %v592, %v713
    %v723 = vmul.f32 %v715, %v715
    %v724 = vmul.f32 %v716, %v716
    %v725 = vmul.f32 %v717, %v717
    %v726 = vmul.f32 %v718, %v718
    %v727 = vmul.f32 %v719, %v719
    %v728 = vmul.f32 %v720, %v720
    %v729 = vmul.f32 %v721, %v721
    %v730 = vmul.f32 %v722, %v722
    %v731 = vadd.f32 %v723, %v724
    %732 = vadd.xlane.f32.xlu0 %v731
    %v733 = vpop.xlane.xlu0 %732
    %v734 = vadd.f32 %v725, %v726
    %735 = vadd.xlane.f32.xlu0 %v734
    %v736 = vpop.xlane.xlu0 %735
    %v737 = vadd.f32 %v727, %v728
    %738 = vadd.xlane.f32.xlu0 %v737
    %v739 = vpop.xlane.xlu0 %738
    %v740 = vadd.f32 %v729, %v730
    %741 = vadd.xlane.f32.xlu0 %v740
    %v742 = vpop.xlane.xlu0 %741
    %v743 = vmul.f32 %v733, %v168
    %v744 = vmul.f32 %v736, %v168
    %v745 = vmul.f32 %v739, %v168
    %v746 = vmul.f32 %v742, %v168
    %747 = vmatprep.subr.mxu0 0.0
    %748 = vmatpush1.msra.mxu0 0.0
    %749 = vmatprep.subr.mxu0 0.0
    %750 = vmatpush1.msra.mxu0 0.0
    %751 = vmatprep.subr.mxu0 0.0
    %752 = vmatpush1.msra.mxu0 0.0
    %753 = vmatprep.subr.mxu0 0.0
    %754 = vmatpush1.msra.mxu0 0.0
    %755 = vmatprep.subr.mxu0 0.0
    %756 = vmatpush1.msra.mxu0 0.0
    %757 = vmatprep.subr.mxu0 0.0
    %758 = vmatpush1.msra.mxu0 0.0
    %759 = vmatprep.subr.mxu0 0.0
    %760 = vmatpush1.msra.mxu0 0.0
    %761 = vmatprep.subr.mxu0 0.0
    %762 = vmatpush1.msra.mxu0 0.0
    %763 = vmatprep.subr.mxu0 0.0
    %764 = vmatpush1.msra.mxu0 0.0
    %765 = vmatprep.subr.mxu0 0.0
    %766 = vmatpush1.msra.mxu0 0.0
    %767 = vmatprep.subr.mxu0 0.0
    %768 = vmatpush1.msra.mxu0 0.0
    %769 = vmatprep.subr.mxu0 0.0
    %770 = vmatpush1.msra.mxu0 0.0
    %771 = vmatprep.subr.mxu0 0.0
    %772 = vmatpush1.msra.mxu0 %v746
    %773 = vmatprep.subr.mxu0 0.0
    %774 = vmatpush1.msra.mxu0 %v745
    %775 = vmatprep.subr.mxu0 0.0
    %776 = vmatpush1.msra.mxu0 %v744
    %777 = vmatprep.subr.mxu0 0.0
    %778 = vmatpush1.msra.mxu0 %v743
    %779 = vmatprep.subr.mxu0 0.0
    %780 = vmatpush2.msra.mxu0 0.0
    %781 = vmatprep.subr.mxu0 0.0
    %782 = vmatpush2.msra.mxu0 0.0
    %783 = vmatprep.subr.mxu0 0.0
    %784 = vmatpush2.msra.mxu0 0.0
    %785 = vmatprep.subr.mxu0 0.0
    %786 = vmatpush2.msra.mxu0 0.0
    %787 = vmatprep.subr.mxu0 0.0
    %788 = vmatpush2.msra.mxu0 0.0
    %789 = vmatprep.subr.mxu0 0.0
    %790 = vmatpush2.msra.mxu0 0.0
    %791 = vmatprep.subr.mxu0 0.0
    %792 = vmatpush2.msra.mxu0 0.0
    %793 = vmatprep.subr.mxu0 0.0
    %794 = vmatpush2.msra.mxu0 0.0
    %795 = vmatprep.subr.mxu0 0.0
    %796 = vmatpush2.msra.mxu0 0.0
    %797 = vmatprep.subr.mxu0 0.0
    %798 = vmatpush2.msra.mxu0 0.0
    %799 = vmatprep.subr.mxu0 0.0
    %800 = vmatpush2.msra.mxu0 0.0
    %801 = vmatprep.subr.mxu0 0.0
    %802 = vmatpush2.msra.mxu0 0.0
    %803 = vmatprep.subr.mxu0 0.0
    %804 = vmatpush2.msra.mxu0 0.0
    %805 = vmatprep.subr.mxu0 0.0
    %806 = vmatpush2.msra.mxu0 0.0
    %807 = vmatprep.subr.mxu0 0.0
    %808 = vmatpush2.msra.mxu0 0.0
    %809 = vmatprep.subr.mxu0 0.0
    %810 = vmatpush2.msra.mxu0 0.0
    %811 = vmatprep.mubr.f32.mxu0 0.0
    %812 = vmatmul.mubr.f32.gmra.mxu0 %v175
    %v813 = vpop.f32.mrf.mxu0
    %v814 = vadd.f32 1e-05, %v813
    %v815 = vpop.f32.mrf.mxu0
    %816 = vmatprep.mubr.f32.mxu0 0.0
    %817 = vmatmul.mubr.f32.gmra.mxu0 %v178
    %v818 = vpop.f32.mrf.mxu0
    %v819 = vadd.f32 1e-05, %v818
    %v820 = vpop.f32.mrf.mxu0
    %821 = vmatprep.mubr.f32.mxu0 0.0
    %822 = vmatmul.mubr.f32.gmra.mxu0 %v181
    %v823 = vpop.f32.mrf.mxu0
    %v824 = vadd.f32 1e-05, %v823
    %v825 = vpop.f32.mrf.mxu0
    %826 = vmatprep.mubr.f32.mxu0 0.0
    %827 = vmatmul.mubr.f32.gmra.mxu0 %v184
    %v828 = vpop.f32.mrf.mxu0
    %v829 = vadd.f32 1e-05, %v828
    %v830 = vpop.f32.mrf.mxu0
    %831 = vdwg.mxu0
    %v832 = vrsqrt.pop %v814
    %v833 = vrsqrt.pop %v819
    %v834 = vrsqrt.pop %v824
    %v835 = vrsqrt.pop %v829
    %v836 = vmul.f32 %v832, %v29
    %v837 = vmul.f32 %v833, %v30
    %v838 = vmul.f32 %v834, %v31
    %v839 = vmul.f32 %v835, %v32
    %841 = vset.pattern.permute.xlu0 0
    %842 = vperm.xlu0 %841, %v836
    %v843 = vpop.permute.xlu0 %842
    %846 = vset.pattern.permute.xlu0 0
    %847 = vperm.xlu0 %846, %v837
    %v848 = vpop.permute.xlu0 %847
    %851 = vset.pattern.permute.xlu0 0
    %852 = vperm.xlu0 %851, %v838
    %v853 = vpop.permute.xlu0 %852
    %856 = vset.pattern.permute.xlu0 0
    %857 = vperm.xlu0 %856, %v839
    %v858 = vpop.permute.xlu0 %857
    %v860 = vmul.f32 %v715, %v843
    %v861 = vmul.f32 %v716, %v843
    %v862 = vmul.f32 %v717, %v848
    %v863 = vmul.f32 %v718, %v848
    %v864 = vmul.f32 %v719, %v853
    %v865 = vmul.f32 %v720, %v853
    %v866 = vmul.f32 %v721, %v858
    %v867 = vmul.f32 %v722, %v858
    %v868 = vadd.f32 %v860, %v447
    %v869 = vadd.f32 %v861, %v447
    %v870 = vadd.f32 %v862, %v452
    %v871 = vadd.f32 %v863, %v452
    %v872 = vadd.f32 %v864, %v457
    %v873 = vadd.f32 %v865, %v457
    %v874 = vadd.f32 %v866, %v462
    %v875 = vadd.f32 %v867, %v462
    %v876 = vmax.f32 %v868, 0.0
    %v877 = vmax.f32 %v869, 0.0
    %v878 = vmax.f32 %v870, 0.0
    %v879 = vmax.f32 %v871, 0.0
    %v880 = vmax.f32 %v872, 0.0
    %v881 = vmax.f32 %v873, 0.0
    %v882 = vmax.f32 %v874, 0.0
    %v883 = vmax.f32 %v875, 0.0
    %s884 = scalar_lea.vmem [#allocation2], 64
    %885 = vst [vmem:[%s884] sm:$0xff] %v876
    %886 = vst [vmem:[%s884 + $0x8] sm:$0xff] %v877
    %887 = vst [vmem:[%s884 + $0x10] sm:$0xff] %v878
    %888 = vst [vmem:[%s884 + $0x18] sm:$0xff] %v879
    %889 = vst [vmem:[%s884 + $0x20] sm:$0xff] %v880
    %890 = vst [vmem:[%s884 + $0x28] sm:$0xff] %v881
    %891 = vst [vmem:[%s884 + $0x30] sm:$0xff] %v882
    %892 = vst [vmem:[%s884 + $0x38] sm:$0xff] %v883
    // Predicated region
    $region22: #{tpu_custom_call.1} parent=1 // pred_check
      _
    $region23: #{tpu_custom_call.1} parent=1 // pred_check_branch
      %894 = sbr.rel (0) target = $region25
    $region24: #{tpu_custom_call.1} parent=1 // pred_region
      %s896 = ssub.s32 2048, 2048
      %897 = vsyncadd [#allocation3], %s896
      %s898 = sshll.u32 [#allocation2], 4
      %s899 = int_to_ptr.vmem [resolvable:$true] %s898
      %904 = dma.vmem_to_hbm [thread:$0]  %s899, 2048, %s5, [#allocation3], 256, 256, 16
    $region25: #{tpu_custom_call.1} parent=1 // pred_fallthru
      _
    // Predicated region
    $region26: #{tpu_custom_call.1} parent=1 // pred_check
      _
    $region27: #{tpu_custom_call.1} parent=1 // pred_check_branch
      %906 = sbr.rel (0) target = $region29
    $region28: #{tpu_custom_call.1} parent=1 // pred_region
      %907 = dma.done [#allocation3], 2048
    $region29: #{tpu_custom_call.1} parent=1 // pred_fallthru
      _
    %908 = vsyncpa [#allocation3], 1

</llo_original>
